<compile_context>
chip_gen: v6e
topology: v6e:2x2x1
jax: 0.10.0
libtpu: 0.0.40
codegen_flags: <defaults>
</compile_context>

<pallas_src>
import functools

import jax
import jax.numpy as jnp
from jax.experimental import pallas as pl
from jax.experimental.pallas import tpu as pltpu


def _actor_kernel(x_ref, w1_ref, b1_ref, w2_ref, b2_ref, w3_ref, b3_ref,
                  out_ref, *, max_action):
    x = x_ref[...]                                            # [tb, S] row-major tile

    # Layer 1: h1^T = relu(W1 . x^T + b1). Contract the shared S axis directly
    # (q@k.T pattern) -> lane-dense [5, tb] result, no materialized transpose.
    h = jnp.einsum("ok,bk->ob", w1_ref[...], x,
                   preferred_element_type=jnp.float32)
    h = jnp.maximum(h + b1_ref[...], 0.0)                     # [5, tb]

    # Layer 2: h2^T = relu(W2 . h1^T + b2)
    h = jnp.einsum("ok,kb->ob", w2_ref[...], h,
                   preferred_element_type=jnp.float32)
    h = jnp.maximum(h + b2_ref[...], 0.0)                     # [3, tb]

    # Layer 3 + tanh head; stored lane-dense as [A, tb].
    a = jnp.einsum("ok,kb->ob", w3_ref[...], h,
                   preferred_element_type=jnp.float32)
    out_ref[...] = max_action * jnp.tanh(a + b3_ref[...])


def _ceil_to(x, m):
    return ((x + m - 1) // m) * m


def _choose_batch_tile(B, tile_b):
    """Lane-aligned batch tile; >= 2 grid steps whenever the batch allows it."""
    tile_b = max(128, min(int(tile_b), 32768))   # cap sized for v7x's 64 MiB VMEM
    if B <= 256:
        return B                                  # single full-batch tile (block == array)
    half = -(-B // 2)                             # ceil(B/2): guarantees >= 2 steps (v7x megacore)
    return max(128, (min(tile_b, half) // 128) * 128)


def actor_forward(state, params, max_action, *, tile_b=16384):
    """Pallas equivalent of Actor.forward(state) -> action, shape [B, action_dim]."""
    B, S = state.shape
    w1, b1 = params["l1"]
    w2, b2 = params["l2"]
    w3, b3 = params["l3"]
    A = w3.shape[0]

    tb = _choose_batch_tile(B, tile_b)
    grid = (pl.cdiv(B, tb),)

    # VMEM budget: double-buffered [tb, S] input (lane-padded to 128) +
    # double-buffered [A, tb] output + the tiny padded parameter tiles.
    in_bytes = 2 * _ceil_to(tb, 8) * _ceil_to(S, 128) * 4
    out_bytes = 2 * _ceil_to(A, 8) * _ceil_to(tb, 128) * 4
    par_bytes = 6 * 2 * 8 * 128 * 4
    vmem_limit = int(min(max(in_bytes + out_bytes + par_bytes + (8 << 20),
                             32 << 20), 48 << 20))

    kernel = functools.partial(_actor_kernel, max_action=float(max_action))

    def full_block(shape):
        return pl.BlockSpec(shape, lambda i: (0, 0))

    args = (state,
            w1, b1.reshape(-1, 1),
            w2, b2.reshape(-1, 1),
            w3, b3.reshape(-1, 1))
    in_specs = [
        pl.BlockSpec((tb, S), lambda i: (i, 0)),
        full_block(w1.shape), full_block((w1.shape[0], 1)),
        full_block(w2.shape), full_block((w2.shape[0], 1)),
        full_block(w3.shape), full_block((w3.shape[0], 1)),
    ]

    out_t = pl.pallas_call(
        kernel,
        grid=grid,
        out_shape=jax.ShapeDtypeStruct((A, B), jnp.float32),
        in_specs=in_specs,
        out_specs=pl.BlockSpec((A, tb), lambda i: (0, i)),
        compiler_params=pltpu.CompilerParams(
            dimension_semantics=("parallel",),
            vmem_limit_bytes=vmem_limit),
    )(*args)

    # Kernel emits the lane-dense [A, B] slab; hand back the module's
    # row-major [B, A] view (cheap XLA layout plumbing).
    return out_t.T


def init_actor_params(key, state_dim, action_dim):
    """PyTorch-style nn.Linear params: weight [out, in], bias [out]."""
    sizes = {"l1": (state_dim, 5), "l2": (5, 3), "l3": (3, action_dim)}
    params = {}
    for name, (fan_in, fan_out) in sizes.items():
        key, kw, kb = jax.random.split(key, 3)
        bound = 1.0 / float(fan_in) ** 0.5
        w = jax.random.uniform(kw, (fan_out, fan_in), jnp.float32, -bound, bound)
        b = jax.random.uniform(kb, (fan_out,), jnp.float32, -bound, bound)
        params[name] = (w, b)
    return params


def actor_forward_ref(state, params, max_action):
    """Pure-JAX reference (PyTorch semantics: y = x @ W^T + b)."""
    w, b = params["l1"]
    h = jnp.maximum(state @ w.T + b, 0.0)
    w, b = params["l2"]
    h = jnp.maximum(h @ w.T + b, 0.0)
    w, b = params["l3"]
    return max_action * jnp.tanh(h @ w.T + b)


if __name__ == "__main__":
    key = jax.random.PRNGKey(0)
    k_params, k_small, k_big = jax.random.split(key, 3)

    state_dim, action_dim, max_action = 17, 6, 2.0
    params = init_actor_params(k_params, state_dim, action_dim)

    fwd = jax.jit(functools.partial(actor_forward, max_action=max_action))

    # Small single-tile batch (block == full array dims).
    state_small = jax.random.normal(k_small, (8, state_dim), jnp.float32)
    out_small = fwd(state_small, params)
    jax.block_until_ready(out_small)
    ref_small = actor_forward_ref(state_small, params, max_action)
    assert out_small.shape == (8, action_dim)
    assert jnp.allclose(out_small, ref_small, atol=1e-4, rtol=1e-5)

    # Larger batch exercising the lane-aligned multi-step grid + ragged tail.
    state_big = jax.random.normal(k_big, (1000, state_dim), jnp.float32)
    out_big = fwd(state_big, params)
    jax.block_until_ready(out_big)
    ref_big = actor_forward_ref(state_big, params, max_action)
    assert out_big.shape == (1000, action_dim)
    assert jnp.allclose(out_big, ref_big, atol=1e-4, rtol=1e-5)

    print("KERNEL_OK")
</pallas_src>

<mosaic_0001>
module attributes {stable_mosaic.version = 11 : i64} {
  func.func @_actor_kernel(%arg0: i32, %arg1: memref<8x17xf32, #tpu.memory_space<vmem>>, %arg2: memref<5x17xf32, #tpu.memory_space<vmem>>, %arg3: memref<5x1xf32, #tpu.memory_space<vmem>>, %arg4: memref<3x5xf32, #tpu.memory_space<vmem>>, %arg5: memref<3x1xf32, #tpu.memory_space<vmem>>, %arg6: memref<6x3xf32, #tpu.memory_space<vmem>>, %arg7: memref<6x1xf32, #tpu.memory_space<vmem>>, %arg8: memref<6x8xf32, #tpu.memory_space<vmem>>) attributes {dimension_semantics = [#tpu.dimension_semantics<parallel>], iteration_bounds = array<i64: 1>, scalar_prefetch = 0 : i64, scratch_operands = 0 : i64, tpu.core_type = #tpu.core_type<tc>, window_params = [{transform_indices = @transform_0, window_bounds = array<i64: 8, 17>}, {pipeline_mode = #tpu.pipeline_mode<synchronous>, transform_indices = @transform_1, window_bounds = array<i64: 5, 17>}, {pipeline_mode = #tpu.pipeline_mode<synchronous>, transform_indices = @transform_2, window_bounds = array<i64: 5, 1>}, {pipeline_mode = #tpu.pipeline_mode<synchronous>, transform_indices = @transform_3, window_bounds = array<i64: 3, 5>}, {pipeline_mode = #tpu.pipeline_mode<synchronous>, transform_indices = @transform_4, window_bounds = array<i64: 3, 1>}, {pipeline_mode = #tpu.pipeline_mode<synchronous>, transform_indices = @transform_5, window_bounds = array<i64: 6, 3>}, {pipeline_mode = #tpu.pipeline_mode<synchronous>, transform_indices = @transform_6, window_bounds = array<i64: 6, 1>}, {transform_indices = @transform_7, window_bounds = array<i64: 6, 8>}]} {
    %c0 = arith.constant 0 : index
    %c0_0 = arith.constant 0 : index
    %0 = vector.load %arg1[%c0, %c0_0] : memref<8x17xf32, #tpu.memory_space<vmem>>, vector<8x17xf32>
    %c0_1 = arith.constant 0 : index
    %c0_2 = arith.constant 0 : index
    %1 = vector.load %arg2[%c0_1, %c0_2] : memref<5x17xf32, #tpu.memory_space<vmem>>, vector<5x17xf32>
    "tpu.trace_start"() <{level = 10 : i32, message = "ok,bk->ob"}> : () -> ()
    %cst = arith.constant dense<0.000000e+00> : vector<5x8xf32>
    %2 = tpu.matmul %1, %0, %cst {dimension_numbers = #tpu.dot_dimension_numbers<[1], [1], [0], [0], [0, 0, 1, 0], [], []>} : vector<5x17xf32>, vector<8x17xf32>, vector<5x8xf32> -> vector<5x8xf32>
    "tpu.trace_stop"() : () -> ()
    %c0_3 = arith.constant 0 : index
    %c0_4 = arith.constant 0 : index
    %3 = vector.load %arg3[%c0_3, %c0_4] : memref<5x1xf32, #tpu.memory_space<vmem>>, vector<5x1xf32>
    %4 = vector.broadcast %3 : vector<5x1xf32> to vector<5x8xf32>
    %5 = arith.addf %2, %4 : vector<5x8xf32>
    %cst_5 = arith.constant 0.000000e+00 : f32
    %6 = vector.broadcast %cst_5 : f32 to vector<5x8xf32>
    %7 = arith.maximumf %5, %6 : vector<5x8xf32>
    %c0_6 = arith.constant 0 : index
    %c0_7 = arith.constant 0 : index
    %8 = vector.load %arg4[%c0_6, %c0_7] : memref<3x5xf32, #tpu.memory_space<vmem>>, vector<3x5xf32>
    "tpu.trace_start"() <{level = 10 : i32, message = "ok,kb->ob"}> : () -> ()
    %cst_8 = arith.constant dense<0.000000e+00> : vector<3x8xf32>
    %9 = tpu.matmul %8, %7, %cst_8 {dimension_numbers = #tpu.dot_dimension_numbers<[1], [0], [0], [1], [0, 0, 1, 1], [], []>} : vector<3x5xf32>, vector<5x8xf32>, vector<3x8xf32> -> vector<3x8xf32>
    "tpu.trace_stop"() : () -> ()
    %c0_9 = arith.constant 0 : index
    %c0_10 = arith.constant 0 : index
    %10 = vector.load %arg5[%c0_9, %c0_10] : memref<3x1xf32, #tpu.memory_space<vmem>>, vector<3x1xf32>
    %11 = vector.broadcast %10 : vector<3x1xf32> to vector<3x8xf32>
    %12 = arith.addf %9, %11 : vector<3x8xf32>
    %cst_11 = arith.constant 0.000000e+00 : f32
    %13 = vector.broadcast %cst_11 : f32 to vector<3x8xf32>
    %14 = arith.maximumf %12, %13 : vector<3x8xf32>
    %c0_12 = arith.constant 0 : index
    %c0_13 = arith.constant 0 : index
    %15 = vector.load %arg6[%c0_12, %c0_13] : memref<6x3xf32, #tpu.memory_space<vmem>>, vector<6x3xf32>
    "tpu.trace_start"() <{level = 10 : i32, message = "ok,kb->ob"}> : () -> ()
    %cst_14 = arith.constant dense<0.000000e+00> : vector<6x8xf32>
    %16 = tpu.matmul %15, %14, %cst_14 {dimension_numbers = #tpu.dot_dimension_numbers<[1], [0], [0], [1], [0, 0, 1, 1], [], []>} : vector<6x3xf32>, vector<3x8xf32>, vector<6x8xf32> -> vector<6x8xf32>
    "tpu.trace_stop"() : () -> ()
    %c0_15 = arith.constant 0 : index
    %c0_16 = arith.constant 0 : index
    %17 = vector.load %arg7[%c0_15, %c0_16] : memref<6x1xf32, #tpu.memory_space<vmem>>, vector<6x1xf32>
    %18 = vector.broadcast %17 : vector<6x1xf32> to vector<6x8xf32>
    %19 = arith.addf %16, %18 : vector<6x8xf32>
    %20 = math.tanh %19 : vector<6x8xf32>
    %cst_17 = arith.constant 2.000000e+00 : f32
    %21 = vector.broadcast %cst_17 : f32 to vector<6x8xf32>
    %22 = arith.mulf %21, %20 : vector<6x8xf32>
    %c0_18 = arith.constant 0 : index
    %c0_19 = arith.constant 0 : index
    %23 = vector.load %arg8[%c0_18, %c0_19] : memref<6x8xf32, #tpu.memory_space<vmem>>, vector<6x8xf32>
    tpu.vector_store %arg8[%c0_18, %c0_19], %22 {strides = array<i32>} : memref<6x8xf32, #tpu.memory_space<vmem>>, vector<6x8xf32>,
    return
  }
  func.func @transform_0(%arg0: i32) -> (i32, i32) {
    %c0_i32 = arith.constant 0 : i32
    %c0_i32_0 = arith.constant 0 : i32
    return %arg0, %c0_i32 : i32, i32
  }
  func.func @transform_1(%arg0: i32) -> (i32, i32) {
    %c0_i32 = arith.constant 0 : i32
    %c0_i32_0 = arith.constant 0 : i32
    %c0_i32_1 = arith.constant 0 : i32
    return %c0_i32, %c0_i32_0 : i32, i32
  }
  func.func @transform_2(%arg0: i32) -> (i32, i32) {
    %c0_i32 = arith.constant 0 : i32
    %c0_i32_0 = arith.constant 0 : i32
    %c0_i32_1 = arith.constant 0 : i32
    return %c0_i32, %c0_i32_0 : i32, i32
  }
  func.func @transform_3(%arg0: i32) -> (i32, i32) {
    %c0_i32 = arith.constant 0 : i32
    %c0_i32_0 = arith.constant 0 : i32
    %c0_i32_1 = arith.constant 0 : i32
    return %c0_i32, %c0_i32_0 : i32, i32
  }
  func.func @transform_4(%arg0: i32) -> (i32, i32) {
    %c0_i32 = arith.constant 0 : i32
    %c0_i32_0 = arith.constant 0 : i32
    %c0_i32_1 = arith.constant 0 : i32
    return %c0_i32, %c0_i32_0 : i32, i32
  }
  func.func @transform_5(%arg0: i32) -> (i32, i32) {
    %c0_i32 = arith.constant 0 : i32
    %c0_i32_0 = arith.constant 0 : i32
    %c0_i32_1 = arith.constant 0 : i32
    return %c0_i32, %c0_i32_0 : i32, i32
  }
  func.func @transform_6(%arg0: i32) -> (i32, i32) {
    %c0_i32 = arith.constant 0 : i32
    %c0_i32_0 = arith.constant 0 : i32
    %c0_i32_1 = arith.constant 0 : i32
    return %c0_i32, %c0_i32_0 : i32, i32
  }
  func.func @transform_7(%arg0: i32) -> (i32, i32) {
    %c0_i32 = arith.constant 0 : i32
    %c0_i32_0 = arith.constant 0 : i32
    return %c0_i32, %arg0 : i32, i32
  }
}

</mosaic_0001>

<llo_original>
// kernel: actor_forward.1
$region0: #{actor_forward.1}
  #allocation0 [shape = 'u32[]', space=smem, size = 0x4, offset = 0x4, fixed_abs, tag = 'smem constant byte address 0x4 - core index']
  #allocation1 [shape = 'u32[144,128]{1,0:T(1,128)}', space=vmem, size = 0x12000, scoped, tag = 'internal scratch']
  %s0 = inlined_call_operand.vmem [shape: f32[8,17], index: 0, kind: input, shape index: {}]
  %s1 = inlined_call_operand.vmem [shape: f32[5,17], index: 1, kind: input, shape index: {}]
  %s2 = inlined_call_operand.vmem [shape: f32[5,1], index: 2, kind: input, shape index: {}]
  %s3 = inlined_call_operand.vmem [shape: f32[3,5], index: 3, kind: input, shape index: {}]
  %s4 = inlined_call_operand.vmem [shape: f32[3,1], index: 4, kind: input, shape index: {}]
  %s5 = inlined_call_operand.vmem [shape: f32[6,3], index: 5, kind: input, shape index: {}]
  %s6 = inlined_call_operand.vmem [shape: f32[6,1], index: 6, kind: input, shape index: {}]
  %s7 = inlined_call_operand.vmem [shape: f32[6,8], index: 7, kind: output, shape index: {}]
  %s8 = sld [smem:[#allocation0]]
  $region38: #{actor_forward.1} parent=0
    _
  %s10 = ssub.s32 1, %s8
  %s11 = scalar_select 0, %s10, %s8
  // Predicated region
  $region2: #{actor_forward.1} parent=0 // pred_check
    _
  $region3: #{actor_forward.1} parent=0 // pred_check_branch
    %13 = sbr.rel (0) target = $region5
  $region4: #{actor_forward.1} parent=0 // pred_region
    _
  $region5: #{actor_forward.1} parent=0 // pred_fallthru
    _
  // Predicated region
  $region6: #{actor_forward.1} parent=0 // pred_check
    _
  $region7: #{actor_forward.1} parent=0 // pred_check_branch
    %15 = sbr.rel (0) target = $region9
  $region8: #{actor_forward.1} parent=0 // pred_region
    _
  $region9: #{actor_forward.1} parent=0 // pred_fallthru
    _
  // Predicated region
  $region10: #{actor_forward.1} parent=0 // pred_check
    _
  $region11: #{actor_forward.1} parent=0 // pred_check_branch
    %17 = sbr.rel (0) target = $region13
  $region12: #{actor_forward.1} parent=0 // pred_region
    _
  $region13: #{actor_forward.1} parent=0 // pred_fallthru
    _
  // Predicated region
  $region14: #{actor_forward.1} parent=0 // pred_check
    _
  $region15: #{actor_forward.1} parent=0 // pred_check_branch
    %19 = sbr.rel (0) target = $region17
  $region16: #{actor_forward.1} parent=0 // pred_region
    _
  $region17: #{actor_forward.1} parent=0 // pred_fallthru
    _
  // Predicated region
  $region18: #{actor_forward.1} parent=0 // pred_check
    _
  $region19: #{actor_forward.1} parent=0 // pred_check_branch
    %21 = sbr.rel (0) target = $region21
  $region20: #{actor_forward.1} parent=0 // pred_region
    _
  $region21: #{actor_forward.1} parent=0 // pred_fallthru
    _
  // Predicated region
  $region22: #{actor_forward.1} parent=0 // pred_check
    _
  $region23: #{actor_forward.1} parent=0 // pred_check_branch
    %23 = sbr.rel (0) target = $region25
  $region24: #{actor_forward.1} parent=0 // pred_region
    _
  $region25: #{actor_forward.1} parent=0 // pred_fallthru
    _
  // Predicated region
  $region26: #{actor_forward.1} parent=0 // pred_check
    _
  $region27: #{actor_forward.1} parent=0 // pred_check_branch
    %25 = sbr.rel (0) target = $region29
  $region28: #{actor_forward.1} parent=0 // pred_region
    _
  $region29: #{actor_forward.1} parent=0 // pred_fallthru
    _
  %v26 = vld [vmem:[%s0] sm:$0xff]
  %v27 = vld [vmem:[%s1] sm:$0x1f]
  %v28 = vld [vmem:[%s2] sm:$0x1f]
  %30 = vset.pattern.permute.xlu0 0
  %31 = vperm.xlu0 %30, %v28
  %v32 = vpop.permute.xlu0 %31
  %vm34 = vcmask 138240
  %v36 = vsel %vm34, %v27, 0
  %v39 = vsel %vm34, %v26, 0
  %41 = vmatprep.subr.mxu0 0.0
  %42 = vmatpush1.xpose.msra.mxu0 0.0
  %43 = vmatprep.subr.mxu0 0.0
  %44 = vmatpush1.xpose.msra.mxu0 0.0
  %45 = vmatprep.subr.mxu0 0.0
  %46 = vmatpush1.xpose.msra.mxu0 0.0
  %47 = vmatprep.subr.mxu0 0.0
  %48 = vmatpush1.xpose.msra.mxu0 0.0
  %49 = vmatprep.subr.mxu0 0.0
  %50 = vmatpush1.xpose.msra.mxu0 0.0
  %51 = vmatprep.subr.mxu0 0.0
  %52 = vmatpush1.xpose.msra.mxu0 0.0
  %53 = vmatprep.subr.mxu0 0.0
  %54 = vmatpush1.xpose.msra.mxu0 0.0
  %55 = vmatprep.subr.mxu0 0.0
  %56 = vmatpush1.xpose.msra.mxu0 0.0
  %57 = vmatprep.subr.mxu0 0.0
  %58 = vmatpush1.xpose.msra.mxu0 0.0
  %59 = vmatprep.subr.mxu0 0.0
  %60 = vmatpush1.xpose.msra.mxu0 0.0
  %61 = vmatprep.subr.mxu0 0.0
  %62 = vmatpush1.xpose.msra.mxu0 0.0
  %63 = vmatprep.subr.mxu0 0.0
  %64 = vmatpush1.xpose.msra.mxu0 0.0
  %65 = vmatprep.subr.mxu0 0.0
  %66 = vmatpush1.xpose.msra.mxu0 0.0
  %67 = vmatprep.subr.mxu0 0.0
  %68 = vmatpush1.xpose.msra.mxu0 0.0
  %69 = vmatprep.subr.mxu0 0.0
  %70 = vmatpush1.xpose.msra.mxu0 0.0
  %71 = vmatprep.subr.mxu0 0.0
  %72 = vmatpush1.xpose.msra.mxu0 %v39
  %73 = vmatprep.subr.mxu0 0.0
  %74 = vmatpush2.xpose.msra.mxu0 0.0
  %75 = vmatprep.subr.mxu0 0.0
  %76 = vmatpush2.xpose.msra.mxu0 0.0
  %77 = vmatprep.subr.mxu0 0.0
  %78 = vmatpush2.xpose.msra.mxu0 0.0
  %79 = vmatprep.subr.mxu0 0.0
  %80 = vmatpush2.xpose.msra.mxu0 0.0
  %81 = vmatprep.subr.mxu0 0.0
  %82 = vmatpush2.xpose.msra.mxu0 0.0
  %83 = vmatprep.subr.mxu0 0.0
  %84 = vmatpush2.xpose.msra.mxu0 0.0
  %85 = vmatprep.subr.mxu0 0.0
  %86 = vmatpush2.xpose.msra.mxu0 0.0
  %87 = vmatprep.subr.mxu0 0.0
  %88 = vmatpush2.xpose.msra.mxu0 0.0
  %89 = vmatprep.subr.mxu0 0.0
  %90 = vmatpush2.xpose.msra.mxu0 0.0
  %91 = vmatprep.subr.mxu0 0.0
  %92 = vmatpush2.xpose.msra.mxu0 0.0
  %93 = vmatprep.subr.mxu0 0.0
  %94 = vmatpush2.xpose.msra.mxu0 0.0
  %95 = vmatprep.subr.mxu0 0.0
  %96 = vmatpush2.xpose.msra.mxu0 0.0
  %97 = vmatprep.subr.mxu0 0.0
  %98 = vmatpush2.xpose.msra.mxu0 0.0
  %99 = vmatprep.subr.mxu0 0.0
  %100 = vmatpush2.xpose.msra.mxu0 0.0
  %101 = vmatprep.subr.mxu0 0.0
  %102 = vmatpush2.xpose.msra.mxu0 0.0
  %103 = vmatprep.subr.mxu0 0.0
  %104 = vmatpush2.xpose.msra.mxu0 0.0
  %105 = vmatprep.mubr.f32.mxu0 0.0
  %106 = vmatmul.mubr.f32.gmra.mxu0 %v36
  %v107 = vpop.f32.mrf.mxu0
  %v108 = vadd.f32 %v32, %v107
  %v109 = vpop.f32.mrf.mxu0
  %110 = vdwg.mxu0
  %v111 = vmax.f32 %v108, 0.0
  %v112 = vld [vmem:[%s3] sm:$0x7]
  %v113 = vld [vmem:[%s4] sm:$0x7]
  %115 = vset.pattern.permute.xlu0 0
  %116 = vperm.xlu0 %115, %v113
  %v117 = vpop.permute.xlu0 %116
  %vm119 = vcmask 39936
  %v121 = vsel %vm119, %v112, 0
  %vm123 = vcmask 1044480
  %v125 = vsel %vm123, %v111, 0
  %127 = vmatprep.subr.mxu0 0.0
  %128 = vmatpush1.msra.mxu0 0.0
  %129 = vmatprep.subr.mxu0 0.0
  %130 = vmatpush1.msra.mxu0 0.0
  %131 = vmatprep.subr.mxu0 0.0
  %132 = vmatpush1.msra.mxu0 0.0
  %133 = vmatprep.subr.mxu0 0.0
  %134 = vmatpush1.msra.mxu0 0.0
  %135 = vmatprep.subr.mxu0 0.0
  %136 = vmatpush1.msra.mxu0 0.0
  %137 = vmatprep.subr.mxu0 0.0
  %138 = vmatpush1.msra.mxu0 0.0
  %139 = vmatprep.subr.mxu0 0.0
  %140 = vmatpush1.msra.mxu0 0.0
  %141 = vmatprep.subr.mxu0 0.0
  %142 = vmatpush1.msra.mxu0 0.0
  %143 = vmatprep.subr.mxu0 0.0
  %144 = vmatpush1.msra.mxu0 0.0
  %145 = vmatprep.subr.mxu0 0.0
  %146 = vmatpush1.msra.mxu0 0.0
  %147 = vmatprep.subr.mxu0 0.0
  %148 = vmatpush1.msra.mxu0 0.0
  %149 = vmatprep.subr.mxu0 0.0
  %150 = vmatpush1.msra.mxu0 0.0
  %151 = vmatprep.subr.mxu0 0.0
  %152 = vmatpush1.msra.mxu0 0.0
  %153 = vmatprep.subr.mxu0 0.0
  %154 = vmatpush1.msra.mxu0 0.0
  %155 = vmatprep.subr.mxu0 0.0
  %156 = vmatpush1.msra.mxu0 0.0
  %157 = vmatprep.subr.mxu0 0.0
  %158 = vmatpush1.msra.mxu0 %v125
  %159 = vmatprep.subr.mxu0 0.0
  %160 = vmatpush2.msra.mxu0 0.0
  %161 = vmatprep.subr.mxu0 0.0
  %162 = vmatpush2.msra.mxu0 0.0
  %163 = vmatprep.subr.mxu0 0.0
  %164 = vmatpush2.msra.mxu0 0.0
  %165 = vmatprep.subr.mxu0 0.0
  %166 = vmatpush2.msra.mxu0 0.0
  %167 = vmatprep.subr.mxu0 0.0
  %168 = vmatpush2.msra.mxu0 0.0
  %169 = vmatprep.subr.mxu0 0.0
  %170 = vmatpush2.msra.mxu0 0.0
  %171 = vmatprep.subr.mxu0 0.0
  %172 = vmatpush2.msra.mxu0 0.0
  %173 = vmatprep.subr.mxu0 0.0
  %174 = vmatpush2.msra.mxu0 0.0
  %175 = vmatprep.subr.mxu0 0.0
  %176 = vmatpush2.msra.mxu0 0.0
  %177 = vmatprep.subr.mxu0 0.0
  %178 = vmatpush2.msra.mxu0 0.0
  %179 = vmatprep.subr.mxu0 0.0
  %180 = vmatpush2.msra.mxu0 0.0
  %181 = vmatprep.subr.mxu0 0.0
  %182 = vmatpush2.msra.mxu0 0.0
  %183 = vmatprep.subr.mxu0 0.0
  %184 = vmatpush2.msra.mxu0 0.0
  %185 = vmatprep.subr.mxu0 0.0
  %186 = vmatpush2.msra.mxu0 0.0
  %187 = vmatprep.subr.mxu0 0.0
  %188 = vmatpush2.msra.mxu0 0.0
  %189 = vmatprep.subr.mxu0 0.0
  %190 = vmatpush2.msra.mxu0 0.0
  %191 = vmatprep.mubr.f32.mxu0 0.0
  %192 = vmatmul.mubr.f32.gmra.mxu0 %v121
  %v193 = vpop.f32.mrf.mxu0
  %v194 = vadd.f32 %v117, %v193
  %v195 = vpop.f32.mrf.mxu0
  %196 = vdwg.mxu0
  %v197 = vmax.f32 %v194, 0.0
  %v198 = vld [vmem:[%s5] sm:$0x3f]
  %v199 = vld [vmem:[%s6] sm:$0x3f]
  %201 = vset.pattern.permute.xlu0 0
  %202 = vperm.xlu0 %201, %v199
  %v203 = vpop.permute.xlu0 %202
  %vm205 = vcmask 23552
  %v207 = vsel %vm205, %v198, 0
  %vm209 = vcmask 1042432
  %v211 = vsel %vm209, %v197, 0
  %213 = vmatprep.subr.mxu0 0.0
  %214 = vmatpush1.msra.mxu0 0.0
  %215 = vmatprep.subr.mxu0 0.0
  %216 = vmatpush1.msra.mxu0 0.0
  %217 = vmatprep.subr.mxu0 0.0
  %218 = vmatpush1.msra.mxu0 0.0
  %219 = vmatprep.subr.mxu0 0.0
  %220 = vmatpush1.msra.mxu0 0.0
  %221 = vmatprep.subr.mxu0 0.0
  %222 = vmatpush1.msra.mxu0 0.0
  %223 = vmatprep.subr.mxu0 0.0
  %224 = vmatpush1.msra.mxu0 0.0
  %225 = vmatprep.subr.mxu0 0.0
  %226 = vmatpush1.msra.mxu0 0.0
  %227 = vmatprep.subr.mxu0 0.0
  %228 = vmatpush1.msra.mxu0 0.0
  %229 = vmatprep.subr.mxu0 0.0
  %230 = vmatpush1.msra.mxu0 0.0
  %231 = vmatprep.subr.mxu0 0.0
  %232 = vmatpush1.msra.mxu0 0.0
  %233 = vmatprep.subr.mxu0 0.0
  %234 = vmatpush1.msra.mxu0 0.0
  %235 = vmatprep.subr.mxu0 0.0
  %236 = vmatpush1.msra.mxu0 0.0
  %237 = vmatprep.subr.mxu0 0.0
  %238 = vmatpush1.msra.mxu0 0.0
  %239 = vmatprep.subr.mxu0 0.0
  %240 = vmatpush1.msra.mxu0 0.0
  %241 = vmatprep.subr.mxu0 0.0
  %242 = vmatpush1.msra.mxu0 0.0
  %243 = vmatprep.subr.mxu0 0.0
  %244 = vmatpush1.msra.mxu0 %v211
  %245 = vmatprep.subr.mxu0 0.0
  %246 = vmatpush2.msra.mxu0 0.0
  %247 = vmatprep.subr.mxu0 0.0
  %248 = vmatpush2.msra.mxu0 0.0
  %249 = vmatprep.subr.mxu0 0.0
  %250 = vmatpush2.msra.mxu0 0.0
  %251 = vmatprep.subr.mxu0 0.0
  %252 = vmatpush2.msra.mxu0 0.0
  %253 = vmatprep.subr.mxu0 0.0
  %254 = vmatpush2.msra.mxu0 0.0
  %255 = vmatprep.subr.mxu0 0.0
  %256 = vmatpush2.msra.mxu0 0.0
  %257 = vmatprep.subr.mxu0 0.0
  %258 = vmatpush2.msra.mxu0 0.0
  %259 = vmatprep.subr.mxu0 0.0
  %260 = vmatpush2.msra.mxu0 0.0
  %261 = vmatprep.subr.mxu0 0.0
  %262 = vmatpush2.msra.mxu0 0.0
  %263 = vmatprep.subr.mxu0 0.0
  %264 = vmatpush2.msra.mxu0 0.0
  %265 = vmatprep.subr.mxu0 0.0
  %266 = vmatpush2.msra.mxu0 0.0
  %267 = vmatprep.subr.mxu0 0.0
  %268 = vmatpush2.msra.mxu0 0.0
  %269 = vmatprep.subr.mxu0 0.0
  %270 = vmatpush2.msra.mxu0 0.0
  %271 = vmatprep.subr.mxu0 0.0
  %272 = vmatpush2.msra.mxu0 0.0
  %273 = vmatprep.subr.mxu0 0.0
  %274 = vmatpush2.msra.mxu0 0.0
  %275 = vmatprep.subr.mxu0 0.0
  %276 = vmatpush2.msra.mxu0 0.0
  %277 = vmatprep.mubr.f32.mxu0 0.0
  %278 = vmatmul.mubr.f32.gmra.mxu0 %v207
  %v279 = vpop.f32.mrf.mxu0
  %v280 = vadd.f32 %v203, %v279
  %v281 = vpop.f32.mrf.mxu0
  %282 = vdwg.mxu0
  %v283 = vtanh.pop %v280
  %v284 = vmul.f32 %v283, 2.0
  %vm285 = vcmask 62464
  %286 = vst.msk [vmem:[%s7] sm:$0x3f] %vm285, %v284
  // Predicated region
  $region30: #{actor_forward.1} parent=0 // pred_check
    _
  $region31: #{actor_forward.1} parent=0 // pred_check_branch
    %288 = sbr.rel (0) target = $region33
  $region32: #{actor_forward.1} parent=0 // pred_region
    _
  $region33: #{actor_forward.1} parent=0 // pred_fallthru
    _
  // Predicated region
  $region34: #{actor_forward.1} parent=0 // pred_check
    _
  $region35: #{actor_forward.1} parent=0 // pred_check_branch
    %290 = sbr.rel (0) target = $region37
  $region36: #{actor_forward.1} parent=0 // pred_region
    _
  $region37: #{actor_forward.1} parent=0 // pred_fallthru
    _

</llo_original>
